<compile_context>
chip_gen: v5e
topology: v5e:2x2
jax: 0.10.0
libtpu: 0.0.40
codegen_flags: <defaults>
</compile_context>

<pallas_src>
import functools

import jax
import jax.numpy as jnp
from jax.experimental import pallas as pl
from jax.experimental.pallas import tpu as pltpu


def _identity_kernel(x_ref, o_ref):
    # Abstract forward: no defined compute -> pass the tile through unchanged.
    o_ref[...] = x_ref[...]


def _tile_budget():
    """(tile_bytes, vmem_limit_bytes) sized from the chip's VMEM capacity."""
    try:
        vmem = int(pltpu.get_tpu_info().vmem_capacity_bytes)
    except Exception:  # conservative fallback (v7x-sized VMEM)
        vmem = 64 << 20
    # Pipeline double-buffers both input and output (~4x tile live); keep the
    # tile at <= vmem/16 so we have generous headroom (v5e/v6e -> 8 MiB tiles,
    # v7x -> 4 MiB tiles), and never below 1 MiB.
    tile_bytes = int(max(1 << 20, min(8 << 20, vmem // 16)))
    vmem_limit = int(min(vmem * 3 // 4, max(32 << 20, 6 * tile_bytes)))
    return tile_bytes, vmem_limit


def _pallas_copy_2d(slab, tile_bytes, vmem_limit):
    """Tiled identity copy of a 2D slab at HBM-copy roofline.

    grid uses pl.cdiv so a ragged last row-block is masked by Pallas; the
    input is aliased to the output (real only when the caller donates it).
    """
    rows, lanes = slab.shape
    itemsize = jnp.dtype(slab.dtype).itemsize

    # Rows per tile from the byte budget, rounded down to a sublane multiple.
    block_rows = max(8, (tile_bytes // max(1, lanes * itemsize)) // 8 * 8)
    if block_rows >= rows:
        block_rows = rows  # single full-extent block (always legal)

    grid = (pl.cdiv(rows, block_rows),)
    return pl.pallas_call(
        _identity_kernel,
        out_shape=jax.ShapeDtypeStruct(slab.shape, slab.dtype),
        grid=grid,
        in_specs=[pl.BlockSpec((block_rows, lanes), lambda i: (i, 0))],
        out_specs=pl.BlockSpec((block_rows, lanes), lambda i: (i, 0)),
        input_output_aliases={0: 0},
        compiler_params=pltpu.CompilerParams(
            # Only v7x (2 TensorCores/chip) shards this axis; v5e/v6e run the
            # grid sequentially on their single TC.
            dimension_semantics=("parallel",),
            vmem_limit_bytes=vmem_limit,
        ),
    )(slab)


@functools.partial(jax.jit, donate_argnums=0)
def _pallas_passthrough(x):
    """Template path: materialize the pass-through via a Pallas copy kernel.

    The argument is donated at the jit boundary so input_output_aliases is a
    real in-place alias (otherwise XLA inserts a defensive input copy).
    """
    tile_bytes, vmem_limit = _tile_budget()
    total = x.size

    # Prefer a wide lane-dense slab (unmasked vst); otherwise keep the
    # original last dim and tile over the flattened leading dims.
    lanes = None
    for cand in (1024, 512, 256, 128):
        if total % cand == 0:
            lanes = cand
            break
    if lanes is None:
        lanes = x.shape[-1]

    slab = x.reshape(total // lanes, lanes)  # single reshape
    out_slab = _pallas_copy_2d(slab, tile_bytes, vmem_limit)
    return out_slab.reshape(x.shape)


def abstract_network_forward(net_inps, materialize=False):
    """Mimics AbstractNetwork.forward(net_inps) -> [crit_inp, misc].

    forward() is abstract, so crit_inp is the inputs passed through and misc
    is an empty dict.

    Default (materialize=False): zero-copy — return the input array directly
    (no HBM traffic, no kernel launch).  materialize=True routes through the
    Pallas identity-copy kernel, kept as a template for concrete subclasses.
    """
    x = net_inps["x"]  # NCHW, e.g. (2, 4, 16, 16)
    out = _pallas_passthrough(x) if materialize else x
    crit_inp = {"x": out}
    misc = {}
    return [crit_inp, misc]


if __name__ == "__main__":
    key = jax.random.PRNGKey(0)
    # Small NCHW input consistent with the module's conv-style usage.
    x = jax.random.normal(key, (2, 4, 16, 16), dtype=jnp.float32)

    # 1) Default fast path: pure pass-through, no device work at all.
    crit_inp, misc = abstract_network_forward({"x": x})
    fast_out = jax.block_until_ready(crit_inp["x"])
    assert fast_out is x
    assert misc == {}

    # 2) Template path: exercise the Pallas kernel once.  Donate a separate
    #    buffer so the alias is real and `x` stays valid for the check.
    x_copy = jnp.array(x)
    crit_inp2, misc2 = abstract_network_forward({"x": x_copy}, materialize=True)
    out = jax.block_until_ready(crit_inp2["x"])

    assert out.shape == x.shape
    assert out.dtype == x.dtype
    assert jnp.allclose(out, x)
    assert misc2 == {}
    print("KERNEL_OK")
</pallas_src>

<mosaic_0001>
module attributes {stable_mosaic.version = 11 : i64} {
  func.func @_identity_kernel(%arg0: i32, %arg1: memref<2x1024xf32, #tpu.memory_space<vmem>>, %arg2: memref<2x1024xf32, #tpu.memory_space<vmem>>) attributes {dimension_semantics = [#tpu.dimension_semantics<parallel>], iteration_bounds = array<i64: 1>, scalar_prefetch = 0 : i64, scratch_operands = 0 : i64, tpu.core_type = #tpu.core_type<tc>, window_params = [{transform_indices = @transform_0, window_bounds = array<i64: 2, 1024>}, {transform_indices = @transform_1, window_bounds = array<i64: 2, 1024>}]} {
    %c0 = arith.constant 0 : index
    %c0_0 = arith.constant 0 : index
    %0 = vector.load %arg1[%c0, %c0_0] : memref<2x1024xf32, #tpu.memory_space<vmem>>, vector<2x1024xf32>
    %c0_1 = arith.constant 0 : index
    %c0_2 = arith.constant 0 : index
    %1 = vector.load %arg2[%c0_1, %c0_2] : memref<2x1024xf32, #tpu.memory_space<vmem>>, vector<2x1024xf32>
    tpu.vector_store %arg2[%c0_1, %c0_2], %0 {strides = array<i32>} : memref<2x1024xf32, #tpu.memory_space<vmem>>, vector<2x1024xf32>,
    return
  }
  func.func @transform_0(%arg0: i32) -> (i32, i32) {
    %c0_i32 = arith.constant 0 : i32
    %c0_i32_0 = arith.constant 0 : i32
    return %arg0, %c0_i32 : i32, i32
  }
  func.func @transform_1(%arg0: i32) -> (i32, i32) {
    %c0_i32 = arith.constant 0 : i32
    %c0_i32_0 = arith.constant 0 : i32
    return %arg0, %c0_i32 : i32, i32
  }
}

</mosaic_0001>

<llo_original>
// kernel: _pallas_passthrough.1
$region0: #{_pallas_passthrough.1}
  #allocation0 [shape = 'u32[]', space=smem, size = 0x4, offset = 0x4, fixed_abs, tag = 'smem constant byte address 0x4 - core index']
  #allocation1 [shape = 'u32[72,128]{1,0:T(1,128)}', space=vmem, size = 0x9000, scoped, tag = 'internal scratch']
  %s0 = inlined_call_operand.vmem [shape: f32[2,1024], index: 0, kind: input, shape index: {}, may-alias: {0,1}]
  %s1 = inlined_call_operand.vmem [shape: f32[2,1024], index: 1, kind: output, shape index: {}, may-alias: {0,1}]
  %s2 = sld [smem:[#allocation0]]
  $region14: #{_pallas_passthrough.1} parent=0
    _
  %s4 = ssub.s32 1, %s2
  %s5 = scalar_select 0, %s4, %s2
  // Predicated region
  $region2: #{_pallas_passthrough.1} parent=0 // pred_check
    _
  $region3: #{_pallas_passthrough.1} parent=0 // pred_check_branch
    %7 = sbr.rel (0) target = $region5
  $region4: #{_pallas_passthrough.1} parent=0 // pred_region
    _
  $region5: #{_pallas_passthrough.1} parent=0 // pred_fallthru
    _
  %v8 = vld [vmem:[%s0] sm:$0xff]
  %v9 = vld [vmem:[%s0 + $0x8] sm:$0xff]
  %10 = vst [vmem:[%s1] sm:$0xff] %v8
  %11 = vst [vmem:[%s1 + $0x8] sm:$0xff] %v9
  // Predicated region
  $region6: #{_pallas_passthrough.1} parent=0 // pred_check
    _
  $region7: #{_pallas_passthrough.1} parent=0 // pred_check_branch
    %13 = sbr.rel (0) target = $region9
  $region8: #{_pallas_passthrough.1} parent=0 // pred_region
    _
  $region9: #{_pallas_passthrough.1} parent=0 // pred_fallthru
    _
  // Predicated region
  $region10: #{_pallas_passthrough.1} parent=0 // pred_check
    _
  $region11: #{_pallas_passthrough.1} parent=0 // pred_check_branch
    %15 = sbr.rel (0) target = $region13
  $region12: #{_pallas_passthrough.1} parent=0 // pred_region
    _
  $region13: #{_pallas_passthrough.1} parent=0 // pred_fallthru
    _

</llo_original>
